<compile_context>
chip_gen: v5e
topology: v5e:2x2
jax: 0.10.0
libtpu: 0.0.40
codegen_flags: <defaults>
</compile_context>

<pallas_src>
import functools

import jax
import jax.numpy as jnp
from jax.experimental import pallas as pl
from jax.experimental.pallas import tpu as pltpu


def _attention_kernel(q_ref, k_ref, o_ref, *, scale):
    # q_ref: (G, Fq, D)   k_ref: (G, F, D)   o_ref: (G, Fq, F)
    q = q_ref[...]
    k = k_ref[...]
    # Batched contraction over the trailing feature dim; K^T is never
    # materialized (einsum -> dot_general with a leading batch dim -> feeds the
    # MXU directly, bf16 inputs with f32 accumulation).
    s = jnp.einsum("gqd,gkd->gqk", q, k, preferred_element_type=jnp.float32)
    # Scale in f32 on the scores (exact; these VALU muls are free filler when
    # the kernel is HBM-/MXU-bound).
    s = s * jnp.float32(scale)
    # Numerically-stable row softmax (softmax rows are complete inside a block).
    m = jnp.max(s, axis=-1, keepdims=True)
    # TODO(synk): if profiling shows the single EUP exp slot binding on v6e/v7x
    # after the bandwidth fixes, compute the exponent in bf16 (keep the sum in
    # f32); not done here to preserve accuracy and because v5e has no bf16 EUP.
    e = jnp.exp(s - m)
    denom = jnp.sum(e, axis=-1, keepdims=True)
    # approx=True -> EUP vrcp, off the VALU critical path (~1e-3 relative).
    attn = e * pl.reciprocal(denom, approx=True)
    o_ref[...] = attn.astype(o_ref.dtype)


def _vmem_capacity_bytes():
    """Physical VMEM of the attached TPU; conservative 64 MiB (v7x per-TC)
    fallback if the query is unavailable."""
    default = 64 * 1024 * 1024
    try:
        info = pltpu.get_tpu_info()
    except Exception:
        return default
    for name in ("vmem_capacity_bytes", "vmem_size_bytes", "vmem_bytes"):
        val = getattr(info, name, None)
        if val:
            try:
                return int(val)
            except (TypeError, ValueError):
                pass
    return default


def _pick_tiles(bh, num_frames, depth, in_itemsize, out_itemsize, budget_bytes):
    """Choose (G, Fq): G (batch,head) pairs and Fq query rows per grid step.

    Per-step footprint counts double-buffered Q/K/out blocks plus ~2 f32 copies
    of the score block for in-kernel intermediates.  Prefers full-F rows (no K
    refetch); falls back to query-row tiling when even G=1 overflows the budget
    (large F, mandatory on v7x's 64 MiB VMEM).  Prefers an even number of steps
    on the B*H axis so v7x's two TensorCores get equal work.
    """

    def step_bytes(g, fq):
        q_blk = g * fq * depth * in_itemsize
        k_blk = g * num_frames * depth * in_itemsize
        o_blk = g * fq * num_frames * out_itemsize
        intermediates = 2 * g * fq * num_frames * 4
        return 2 * (q_blk + k_blk + o_blk) + intermediates

    # Fq must be a multiple of 8 (sublane tiling) or the full F.
    fq_cands = [num_frames] + sorted(
        {d for d in range(8, num_frames, 8) if num_frames % d == 0},
        reverse=True)
    divisors = [g for g in range(1, bh + 1) if bh % g == 0]
    for fq in fq_cands:
        fitting = [g for g in divisors if step_bytes(g, fq) <= budget_bytes]
        if not fitting:
            continue
        g_any = max(fitting)
        g_even = max([g for g in fitting if (bh // g) % 2 == 0], default=None)
        # Even step count (v7x megacore balance) unless it shrinks G by >2x.
        if g_even is not None and g_even * 2 >= g_any:
            return g_even, fq
        return g_any, fq
    # Nothing fits (extreme F): minimal tiles; rely on vmem_limit headroom.
    return 1, (8 if num_frames % 8 == 0 else num_frames)


def attention_module(query, key, *, compute_dtype=jnp.bfloat16):
    """Pallas equivalent of AttentionModule.forward (dot_product_type='scaled').

    Args:
      query, key: (batch, num_frames, num_heads, input_size) arrays.
      compute_dtype: dtype fed to the MXU (accumulation is always f32).
    Returns:
      attention: (batch, num_heads, num_frames, num_frames) float32 array.
    """
    B, F, H, D = query.shape
    assert key.shape == (B, F, H, D)
    BH = B * H
    scale = 1.0 / (D ** 0.5)

    # Never widen the inputs; narrow f32 -> bf16 so the transpose copies and
    # the kernel input DMAs are half-width and the MXU uses its native bf16
    # path (accumulation stays f32 inside the kernel).
    in_dtype = jnp.dtype(compute_dtype)
    if jnp.dtype(query.dtype).itemsize <= in_dtype.itemsize:
        in_dtype = jnp.dtype(query.dtype)

    # transpose(-2,-3): (B,F,H,D) -> (B,H,F,D), heads flattened into the grid
    # axis.  allow_input_fusion hints XLA to fold the cast+transpose into the
    # pallas_call input handling instead of a separate HBM round trip.
    # TODO(synk): if HLO shows a materialized transpose, switch to a 4-D
    # BlockSpec on the original (B,F,H,D) layout so the strided input DMA does
    # the layout change instead.
    q = jnp.transpose(query.astype(in_dtype), (0, 2, 1, 3)).reshape(BH, F, D)
    k = jnp.transpose(key.astype(in_dtype), (0, 2, 1, 3)).reshape(BH, F, D)

    vmem_cap = _vmem_capacity_bytes()
    # Generation-aware block budget (~45% of physical VMEM, capped) with an
    # explicit scoped-VMEM limit to match; safe on v5e/v6e (128 MiB) and v7x
    # (64 MiB per TensorCore).
    budget = min(int(vmem_cap * 0.45), 48 * 1024 * 1024)
    G, Fq = _pick_tiles(BH, F, D, in_dtype.itemsize, 4, budget)
    vmem_limit = min(int(vmem_cap * 0.875), 112 * 1024 * 1024)

    kernel = functools.partial(_attention_kernel, scale=scale)

    cost = pl.CostEstimate(
        flops=2 * BH * F * F * D,
        transcendentals=BH * F * F,
        bytes_accessed=2 * BH * F * D * in_dtype.itemsize + BH * F * F * 4,
    )

    # TODO(synk): output stays f32 to match the module semantics; if the
    # consumer tolerates bf16 attention maps, a bf16 out_shape halves the
    # dominant HBM-write traffic (biggest win on v5e).
    out = pl.pallas_call(
        kernel,
        out_shape=jax.ShapeDtypeStruct((BH, F, F), jnp.float32),
        grid_spec=pltpu.PrefetchScalarGridSpec(
            num_scalar_prefetch=0,
            grid=(BH // G, F // Fq),
            in_specs=[
                pl.BlockSpec((G, Fq, D), lambda i, j: (i, j, 0)),
                pl.BlockSpec((G, F, D), lambda i, j: (i, 0, 0)),
            ],
            out_specs=pl.BlockSpec((G, Fq, F), lambda i, j: (i, j, 0)),
        ),
        compiler_params=pltpu.CompilerParams(
            dimension_semantics=("parallel", "parallel"),
            vmem_limit_bytes=vmem_limit,
            allow_input_fusion=[True, True],
        ),
        cost_estimate=cost,
    )(q, k)

    # Splitting the leading dim back into (B, H) is metadata-only (no HBM pass).
    return out.reshape(B, H, F, F)


def _reference(query, key):
    # Pure-JAX reference mirroring the PyTorch module semantics.
    q = jnp.swapaxes(query, -2, -3)
    k = jnp.swapaxes(key, -2, -3)
    s = jnp.matmul(q, jnp.swapaxes(k, -2, -1)) / jnp.sqrt(
        jnp.float32(key.shape[-1]))
    return jax.nn.softmax(s, axis=-1)


if __name__ == "__main__":
    # (batch_size, num_frames, num_heads, input_size)
    B, F, H, D = 2, 8, 4, 32
    rng = jax.random.PRNGKey(0)
    kq, kk = jax.random.split(rng)
    query = jax.random.normal(kq, (B, F, H, D), dtype=jnp.float32)
    key = jax.random.normal(kk, (B, F, H, D), dtype=jnp.float32)

    out = attention_module(query, key)
    out = jax.block_until_ready(out)
    assert out.shape == (B, H, F, F)

    # Tight check vs a reference fed the same bf16-cast inputs (isolates the
    # approx-reciprocal error, ~1e-3 relative).
    ref_bf16 = _reference(query.astype(jnp.bfloat16).astype(jnp.float32),
                          key.astype(jnp.bfloat16).astype(jnp.float32))
    assert jnp.allclose(out, ref_bf16, atol=2e-3, rtol=2e-3)

    # Sanity check vs the full-f32 PyTorch-equivalent reference (bf16 inputs +
    # approx reciprocal stay within a few percent).
    ref_f32 = _reference(query, key)
    assert jnp.allclose(out, ref_f32, atol=5e-2, rtol=5e-2)

    print("KERNEL_OK")
</pallas_src>

<mosaic_0001>
module attributes {stable_mosaic.version = 11 : i64} {
  func.func @_attention_kernel(%arg0: i32, %arg1: i32, %arg2: memref<4x8x32xbf16, #tpu.memory_space<vmem>>, %arg3: memref<4x8x32xbf16, #tpu.memory_space<vmem>>, %arg4: memref<4x8x8xf32, #tpu.memory_space<vmem>>) attributes {dimension_semantics = [#tpu.dimension_semantics<parallel>, #tpu.dimension_semantics<parallel>], iteration_bounds = array<i64: 2, 1>, scalar_prefetch = 0 : i64, scratch_operands = 0 : i64, tpu.core_type = #tpu.core_type<tc>, window_params = [{transform_indices = @transform_0, window_bounds = array<i64: 4, 8, 32>}, {transform_indices = @transform_1, window_bounds = array<i64: 4, 8, 32>}, {transform_indices = @transform_2, window_bounds = array<i64: 4, 8, 8>}]} {
    %c0 = arith.constant 0 : index
    %c0_0 = arith.constant 0 : index
    %c0_1 = arith.constant 0 : index
    %0 = vector.load %arg2[%c0, %c0_0, %c0_1] : memref<4x8x32xbf16, #tpu.memory_space<vmem>>, vector<4x8x32xbf16>
    %c0_2 = arith.constant 0 : index
    %c0_3 = arith.constant 0 : index
    %c0_4 = arith.constant 0 : index
    %1 = vector.load %arg3[%c0_2, %c0_3, %c0_4] : memref<4x8x32xbf16, #tpu.memory_space<vmem>>, vector<4x8x32xbf16>
    "tpu.trace_start"() <{level = 10 : i32, message = "gqd,gkd->gqk"}> : () -> ()
    %cst = arith.constant dense<0.000000e+00> : vector<4x8x8xf32>
    %2 = tpu.matmul %0, %1, %cst {dimension_numbers = #tpu.dot_dimension_numbers<[2], [2], [1], [1], [0, 0, 0, 1, 1, 1], [0], [0]>} : vector<4x8x32xbf16>, vector<4x8x32xbf16>, vector<4x8x8xf32> -> vector<4x8x8xf32>
    "tpu.trace_stop"() : () -> ()
    %cst_5 = arith.constant 0.176776692 : f32
    %3 = vector.broadcast %cst_5 : f32 to vector<4x8x8xf32>
    %4 = arith.mulf %2, %3 : vector<4x8x8xf32>
    %cst_6 = arith.constant dense<0xFF800000> : vector<4x8xf32>
    %5 = vector.multi_reduction <maximumf>, %4, %cst_6 [2] : vector<4x8x8xf32> to vector<4x8xf32>
    %6 = vector.shape_cast %5 : vector<4x8xf32> to vector<4x8x1xf32>
    %7 = vector.broadcast %6 : vector<4x8x1xf32> to vector<4x8x8xf32>
    %8 = arith.subf %4, %7 : vector<4x8x8xf32>
    %9 = math.exp %8 : vector<4x8x8xf32>
    %cst_7 = arith.constant dense<0.000000e+00> : vector<4x8xf32>
    %10 = vector.multi_reduction <add>, %9, %cst_7 [2] : vector<4x8x8xf32> to vector<4x8xf32>
    %11 = vector.shape_cast %10 : vector<4x8xf32> to vector<4x8x1xf32>
    %12 = tpu.reciprocal %11 {approx = true} : vector<4x8x1xf32> -> vector<4x8x1xf32>
    %13 = vector.broadcast %12 : vector<4x8x1xf32> to vector<4x8x8xf32>
    %14 = arith.mulf %9, %13 : vector<4x8x8xf32>
    %c0_8 = arith.constant 0 : index
    %c0_9 = arith.constant 0 : index
    %c0_10 = arith.constant 0 : index
    %15 = vector.load %arg4[%c0_8, %c0_9, %c0_10] : memref<4x8x8xf32, #tpu.memory_space<vmem>>, vector<4x8x8xf32>
    tpu.vector_store %arg4[%c0_8, %c0_9, %c0_10], %14 {strides = array<i32>} : memref<4x8x8xf32, #tpu.memory_space<vmem>>, vector<4x8x8xf32>,
    return
  }
  func.func @transform_0(%arg0: i32, %arg1: i32) -> (i32, i32, i32) {
    %c0_i32 = arith.constant 0 : i32
    %c0_i32_0 = arith.constant 0 : i32
    return %arg0, %arg1, %c0_i32 : i32, i32, i32
  }
  func.func @transform_1(%arg0: i32, %arg1: i32) -> (i32, i32, i32) {
    %c0_i32 = arith.constant 0 : i32
    %c0_i32_0 = arith.constant 0 : i32
    %c0_i32_1 = arith.constant 0 : i32
    return %arg0, %c0_i32, %c0_i32_0 : i32, i32, i32
  }
  func.func @transform_2(%arg0: i32, %arg1: i32) -> (i32, i32, i32) {
    %c0_i32 = arith.constant 0 : i32
    %c0_i32_0 = arith.constant 0 : i32
    return %arg0, %arg1, %c0_i32 : i32, i32, i32
  }
}

</mosaic_0001>

<llo_original>
// kernel: tpu_custom_call.1
$region0: #{tpu_custom_call.1}
  #allocation0 [shape = 'u32[]', space=smem, size = 0x4, offset = 0x4, fixed_abs, tag = 'smem constant byte address 0x4 - core index']
  #allocation1 [shape = 'u32[72,128]{1,0:T(1,128)}', space=vmem, size = 0x9000, scoped, tag = 'internal scratch']
  %s0 = inlined_call_operand.hbm [shape: bf16[8,8,32], index: 0, kind: input, shape index: {}]
  %s1 = inlined_call_operand.hbm [shape: bf16[8,8,32], index: 1, kind: input, shape index: {}]
  %s2 = inlined_call_operand.hbm [shape: f32[8,8,8], index: 2, kind: output, shape index: {}]
  %s3 = sld [smem:[#allocation0]]
  $region49: #{tpu_custom_call.1} parent=0
    _
  %s5 = ssub.s32 1, %s3
  %s6 = scalar_select 0, %s5, %s3
  $region1: #{tpu_custom_call.1} parent=0
    #allocation2 [shape = 'u8[16384]{0}', space=vmem, size = 0x4000, scoped, tag = 'input window, operand 0']
    #allocation3 [shape = 's32[2]{0}', space=sflag, size = 0x8, scoped, tag = 'scoped memory for tpu_custom_call.1']
    #allocation4 [shape = 's32[2]{0}', space=sflag, size = 0x8, scoped, tag = 'scoped memory for tpu_custom_call.1']
    #allocation5 [shape = 'u8[16384]{0}', space=vmem, size = 0x4000, scoped, tag = 'input window, operand 1']
    #allocation6 [shape = 's32[2]{0}', space=sflag, size = 0x8, scoped, tag = 'scoped memory for tpu_custom_call.1']
    #allocation7 [shape = 'u8[32768]{0}', space=vmem, size = 0x8000, scoped, tag = 'output window, operand 0']
    %7 = vsyncpa [#allocation3], 0
    %s8 = scalar_lea.sflag [#allocation3], 1
    %9 = vsyncpa %s8, 0
    %10 = vsyncpa [#allocation6], 0
    %s11 = scalar_lea.sflag [#allocation6], 1
    %12 = vsyncpa %s11, 0
    %13 = vsyncpa [#allocation4], 0
    %s14 = scalar_lea.sflag [#allocation4], 1
    %15 = vsyncpa %s14, 0
    loop: start=0, step=1, limit=4
    $region2: #{tpu_custom_call.1} parent=1 // loop_pre_header
      _
    $region3: #{tpu_custom_call.1} parent=1 // loop_header
      %s17 = sphi 0, %s21
      %p18 = scmp.ge.s32.totalorder %s17, 4
      %s24 = sphi 0, %s36
      %s25 = sphi 0, %s32
      %s26 = sphi 0, %s24
      %s27 = sphi 0, %s25
      %s28 = sphi 0, %s26
      %s29 = sphi 0, %s27
      %s41 = sphi 0, %s43
      %s44 = sphi 0, %s41
      %s45 = sphi 0, %s44
      %s61 = sphi 0, %s45
      %s67 = sphi 0, %s69
      %s70 = sphi 0, %s67
      %s71 = sphi 0, %s70
      %s87 = sphi 0, %s71
      %s95 = sphi 0, %s97
      %s98 = sphi 0, %s95
      %s99 = sphi 0, %s98
      %s115 = sphi 0, %s99
    $region4: #{tpu_custom_call.1} parent=1 // loop_header_branch
      %20 = sbr.rel (%p18) target = $region8
    $region5: #{tpu_custom_call.1} parent=1 // loop_body
      %s22 = ssub.s32 %s17, 1
      %s23 = ssub.s32 %s17, 2
      %s30 = sadd.s32 1, %s25
      %p31 = scmp.ge.s32.totalorder %s30, 1
      %s32 = scalar_select %p31, 0, %s30
      %s33 = sadd.s32 1, %s24
      %s34 = scalar_select %p31, %s33, %s24
      %p35 = scmp.ge.s32.totalorder %s34, 2
      %s36 = scalar_select %p35, 0, %s34
      %s37 = ssub.s32 %s24, %s36
      %s38 = ssub.s32 %s25, %s32
      %s39 = sor.u32 %s37, %s38
      %p40 = scmp.eq.s32.totalorder %s39, 0
      %s42 = sadd.s32 %s41, 1
      %s43 = scalar_select %p40, %s41, %s42
      %p46 = pneg %p40
      %p47 = scmp.eq.s32.totalorder %s17, 1
      %p48 = por %p46, %p47
      %p49 = scmp.ne.s32.totalorder %s41, %s44
      %p50 = scmp.eq.s32.totalorder %s17, 0
      %p51 = por %p49, %p50
      %p52 = scmp.ne.s32.totalorder %s41, %s44
      %p53 = scmp.eq.s32.totalorder %s22, 1
      %p54 = por %p52, %p53
      %p55 = scmp.ne.s32.totalorder %s44, %s45
      %p56 = scmp.eq.s32.totalorder %s22, 0
      %p57 = por %p55, %p56
      %p58 = scmp.ne.s32.totalorder %s44, %s45
      %p59 = scmp.eq.s32.totalorder %s23, 1
      %p60 = por %p58, %p59
      %p62 = scmp.ne.s32.totalorder %s45, %s61
      %p63 = scmp.eq.s32.totalorder %s23, 0
      %p64 = por %p62, %p63
      %s65 = ssub.s32 %s24, %s36
      %p66 = scmp.eq.s32.totalorder %s65, 0
      %s68 = sadd.s32 %s67, 1
      %s69 = scalar_select %p66, %s67, %s68
      %p72 = pneg %p66
      %p73 = scmp.eq.s32.totalorder %s17, 1
      %p74 = por %p72, %p73
      %p75 = scmp.ne.s32.totalorder %s67, %s70
      %p76 = scmp.eq.s32.totalorder %s17, 0
      %p77 = por %p75, %p76
      %p78 = scmp.ne.s32.totalorder %s67, %s70
      %p79 = scmp.eq.s32.totalorder %s22, 1
      %p80 = por %p78, %p79
      %p81 = scmp.ne.s32.totalorder %s70, %s71
      %p82 = scmp.eq.s32.totalorder %s22, 0
      %p83 = por %p81, %p82
      %p84 = scmp.ne.s32.totalorder %s70, %s71
      %p85 = scmp.eq.s32.totalorder %s23, 1
      %p86 = por %p84, %p85
      %p88 = scmp.ne.s32.totalorder %s71, %s87
      %p89 = scmp.eq.s32.totalorder %s23, 0
      %p90 = por %p88, %p89
      %s91 = ssub.s32 %s24, %s36
      %s92 = ssub.s32 %s25, %s32
      %s93 = sor.u32 %s91, %s92
      %p94 = scmp.eq.s32.totalorder %s93, 0
      %s96 = sadd.s32 %s95, 1
      %s97 = scalar_select %p94, %s95, %s96
      %p100 = pneg %p94
      %p101 = scmp.eq.s32.totalorder %s17, 1
      %p102 = por %p100, %p101
      %p103 = scmp.ne.s32.totalorder %s95, %s98
      %p104 = scmp.eq.s32.totalorder %s17, 0
      %p105 = por %p103, %p104
      %p106 = scmp.ne.s32.totalorder %s95, %s98
      %p107 = scmp.eq.s32.totalorder %s22, 1
      %p108 = por %p106, %p107
      %p109 = scmp.ne.s32.totalorder %s98, %s99
      %p110 = scmp.eq.s32.totalorder %s22, 0
      %p111 = por %p109, %p110
      %p112 = scmp.ne.s32.totalorder %s98, %s99
      %p113 = scmp.eq.s32.totalorder %s23, 1
      %p114 = por %p112, %p113
      %p116 = scmp.ne.s32.totalorder %s99, %s115
      %p117 = scmp.eq.s32.totalorder %s23, 0
      %p118 = por %p116, %p117
      %p119 = scmp.le.s32.totalorder 1, %s17
      %p120 = scmp.lt.s32.totalorder %s17, 3
      %p121 = pnand %p119, %p120
      %p122 = pneg %p121
      // Predicated region
      $region9: #{tpu_custom_call.1} parent=5 // pred_check
        _
      $region10: #{tpu_custom_call.1} parent=5 // pred_check_branch
        %124 = sbr.rel (%p121) target = $region12
      $region11: #{tpu_custom_call.1} parent=5 // pred_region
        %s125 = ssub.s32 %s17, 1
      $region12: #{tpu_custom_call.1} parent=5 // pred_fallthru
        _
      %p126 = scmp.lt.s32.totalorder %s17, 2
      // Predicated region
      $region13: #{tpu_custom_call.1} parent=5 // pred_check
        %p127 = pneg %p126
      $region14: #{tpu_custom_call.1} parent=5 // pred_check_branch
        %129 = sbr.rel (%p127) target = $region16
      $region15: #{tpu_custom_call.1} parent=5 // pred_region
        // Predicated region
        $region17: #{tpu_custom_call.1} parent=15 // pred_check
          %p130 = pneg %p51
        $region18: #{tpu_custom_call.1} parent=15 // pred_check_branch
          %132 = sbr.rel (%p130) target = $region20
        $region19: #{tpu_custom_call.1} parent=15 // pred_region
          %s133 = sand.u32 %s41, 1
          %s134 = scalar_lea.sflag [#allocation3], %s133
          %s135 = sand.u32 %s41, 1
          %s136 = smul.addr %s135, 16
          %s137 = scalar_lea.vmem [#allocation2], %s136
          %s138 = smul.u32 4, %s24
          %140 = vsyncadd %s134, 0
          %s141 = sadd.s32 %s25, %s138
          %s142 = smul.addr %s141, 4
          %s143 = scalar_lea.hbm %s0, %s142
          %s144 = sshll.u32 %s143, 4
          %s145 = int_to_ptr.hbm [resolvable:$true] %s144
          %s146 = sshll.u32 %s137, 4
          %s147 = int_to_ptr.vmem [resolvable:$true] %s146
          %152 = dma.hbm_to_vmem [thread:$0]  %s145, 256, %s147, %s134, 64, 64, 4
        $region20: #{tpu_custom_call.1} parent=15 // pred_fallthru
          _
        // Predicated region
        $region21: #{tpu_custom_call.1} parent=15 // pred_check
          %p153 = pneg %p77
        $region22: #{tpu_custom_call.1} parent=15 // pred_check_branch
          %155 = sbr.rel (%p153) target = $region24
        $region23: #{tpu_custom_call.1} parent=15 // pred_region
          %s156 = sand.u32 %s67, 1
          %s157 = scalar_lea.sflag [#allocation6], %s156
          %s158 = sand.u32 %s67, 1
          %s159 = smul.addr %s158, 16
          %s160 = scalar_lea.vmem [#allocation5], %s159
          %s161 = smul.u32 4, %s24
          %163 = vsyncadd %s157, 0
          %s164 = smul.addr %s161, 4
          %s165 = scalar_lea.hbm %s1, %s164
          %s166 = sshll.u32 %s165, 4
          %s167 = int_to_ptr.hbm [resolvable:$true] %s166
          %s168 = sshll.u32 %s160, 4
          %s169 = int_to_ptr.vmem [resolvable:$true] %s168
          %174 = dma.hbm_to_vmem [thread:$0]  %s167, 256, %s169, %s157, 64, 64, 4
        $region24: #{tpu_custom_call.1} parent=15 // pred_fallthru
          _
      $region16: #{tpu_custom_call.1} parent=5 // pred_fallthru
        _
      %p175 = scmp.le.s32.totalorder 1, %s17
      %p176 = scmp.lt.s32.totalorder %s17, 3
      %p177 = pnand %p175, %p176
      %p178 = pneg %p177
      // Predicated region
      $region25: #{tpu_custom_call.1} parent=5 // pred_check
        _
      $region26: #{tpu_custom_call.1} parent=5 // pred_check_branch
        %180 = sbr.rel (%p177) target = $region28
      $region27: #{tpu_custom_call.1} parent=5 // pred_region
        %s181 = ssub.s32 %s17, 1
        %s182 = sand.u32 %s44, 1
        %s183 = scalar_lea.sflag [#allocation3], %s182
        %s184 = sand.u32 %s44, 1
        %s185 = smul.addr %s184, 16
        %s186 = scalar_lea.vmem [#allocation2], %s185
        // Predicated region
        $region29: #{tpu_custom_call.1} parent=27 // pred_check
          %p187 = pneg %p57
        $region30: #{tpu_custom_call.1} parent=27 // pred_check_branch
          %189 = sbr.rel (%p187) target = $region32
        $region31: #{tpu_custom_call.1} parent=27 // pred_region
          %191 = dma.done %s183, 256
        $region32: #{tpu_custom_call.1} parent=27 // pred_fallthru
          _
        %s192 = sand.u32 %s70, 1
        %s193 = scalar_lea.sflag [#allocation6], %s192
        %s194 = sand.u32 %s70, 1
        %s195 = smul.addr %s194, 16
        %s196 = scalar_lea.vmem [#allocation5], %s195
        // Predicated region
        $region33: #{tpu_custom_call.1} parent=27 // pred_check
          %p197 = pneg %p83
        $region34: #{tpu_custom_call.1} parent=27 // pred_check_branch
          %199 = sbr.rel (%p197) target = $region36
        $region35: #{tpu_custom_call.1} parent=27 // pred_region
          %201 = dma.done %s193, 256
        $region36: #{tpu_custom_call.1} parent=27 // pred_fallthru
          _
        %s202 = sand.u32 %s44, 1
        %s203 = scalar_lea.sflag [#allocation3], %s202
        %s204 = sand.u32 %s44, 1
        %s205 = smul.addr %s204, 16
        %s206 = scalar_lea.vmem [#allocation2], %s205
        %p207 = pneg %p57
        %p208 = pneg %p54
        %s209 = sand.u32 %s70, 1
        %s210 = scalar_lea.sflag [#allocation6], %s209
        %s211 = sand.u32 %s70, 1
        %s212 = smul.addr %s211, 16
        %s213 = scalar_lea.vmem [#allocation5], %s212
        %p214 = pneg %p83
        %p215 = pneg %p80
        %p216 = pneg %p111
        %p217 = pneg %p108
        %s218 = sand.u32 %s98, 1
        %s219 = scalar_lea.sflag [#allocation4], %s218
        %s220 = sand.u32 %s98, 1
        %s221 = smul.addr %s220, 32
        %s222 = scalar_lea.vmem [#allocation7], %s221
        %s223 = smul.u32 4, %s26
        %s224 = smul.u32 4, %s26
        %s225 = smul.u32 4, %s26
        %v227 = vld [vmem:[%s186] sm:$0xf]
        %v228 = vld [vmem:[%s186 + $0x4] sm:$0xf]
        %v229 = vld [vmem:[%s186 + $0x8] sm:$0xf]
        %v230 = vld [vmem:[%s186 + $0xc] sm:$0xf]
        %v231 = vld [vmem:[%s196] sm:$0xf]
        %v232 = vld [vmem:[%s196 + $0x4] sm:$0xf]
        %v233 = vld [vmem:[%s196 + $0x8] sm:$0xf]
        %v234 = vld [vmem:[%s196 + $0xc] sm:$0xf]
        %vm235 = vcmask 261120
        %v237 = vsel %vm235, %v227, 0
        %v240 = vsel %vm235, %v231, 0
        %242 = vmatpush.bf16.xpose.msra.mxu0 0
        %243 = vmatpush.bf16.xpose.msra.mxu0 0
        %244 = vmatpush.bf16.xpose.msra.mxu0 0
        %245 = vmatpush.bf16.xpose.msra.mxu0 0
        %246 = vmatpush.bf16.xpose.msra.mxu0 0
        %247 = vmatpush.bf16.xpose.msra.mxu0 0
        %248 = vmatpush.bf16.xpose.msra.mxu0 0
        %249 = vmatpush.bf16.xpose.msra.mxu0 %v240
        %250 = vmatmul.bf16.gmra.mxu0 %v237
        %v251 = vpop.f32.mrf.mxu0
        %v252 = vadd.f32 0.0, %v251
        %v253 = vpop.f32.mrf.mxu0
        %254 = vdwg.mxu0
        %v256 = vsel %vm235, %v228, 0
        %v259 = vsel %vm235, %v232, 0
        %261 = vmatpush.bf16.xpose.msra.mxu0 0
        %262 = vmatpush.bf16.xpose.msra.mxu0 0
        %263 = vmatpush.bf16.xpose.msra.mxu0 0
        %264 = vmatpush.bf16.xpose.msra.mxu0 0
        %265 = vmatpush.bf16.xpose.msra.mxu0 0
        %266 = vmatpush.bf16.xpose.msra.mxu0 0
        %267 = vmatpush.bf16.xpose.msra.mxu0 0
        %268 = vmatpush.bf16.xpose.msra.mxu0 %v259
        %269 = vmatmul.bf16.gmra.mxu0 %v256
        %v270 = vpop.f32.mrf.mxu0
        %v271 = vadd.f32 0.0, %v270
        %v272 = vpop.f32.mrf.mxu0
        %273 = vdwg.mxu0
        %v275 = vsel %vm235, %v229, 0
        %v278 = vsel %vm235, %v233, 0
        %280 = vmatpush.bf16.xpose.msra.mxu0 0
        %281 = vmatpush.bf16.xpose.msra.mxu0 0
        %282 = vmatpush.bf16.xpose.msra.mxu0 0
        %283 = vmatpush.bf16.xpose.msra.mxu0 0
        %284 = vmatpush.bf16.xpose.msra.mxu0 0
        %285 = vmatpush.bf16.xpose.msra.mxu0 0
        %286 = vmatpush.bf16.xpose.msra.mxu0 0
        %287 = vmatpush.bf16.xpose.msra.mxu0 %v278
        %288 = vmatmul.bf16.gmra.mxu0 %v275
        %v289 = vpop.f32.mrf.mxu0
        %v290 = vadd.f32 0.0, %v289
        %v291 = vpop.f32.mrf.mxu0
        %292 = vdwg.mxu0
        %v294 = vsel %vm235, %v230, 0
        %v297 = vsel %vm235, %v234, 0
        %299 = vmatpush.bf16.xpose.msra.mxu0 0
        %300 = vmatpush.bf16.xpose.msra.mxu0 0
        %301 = vmatpush.bf16.xpose.msra.mxu0 0
        %302 = vmatpush.bf16.xpose.msra.mxu0 0
        %303 = vmatpush.bf16.xpose.msra.mxu0 0
        %304 = vmatpush.bf16.xpose.msra.mxu0 0
        %305 = vmatpush.bf16.xpose.msra.mxu0 0
        %306 = vmatpush.bf16.xpose.msra.mxu0 %v297
        %307 = vmatmul.bf16.gmra.mxu0 %v294
        %v308 = vpop.f32.mrf.mxu0
        %v309 = vadd.f32 0.0, %v308
        %v310 = vpop.f32.mrf.mxu0
        %311 = vdwg.mxu0
        %v312 = vmul.f32 %v252, 0.17677669
        %v313 = vmul.f32 %v271, 0.17677669
        %v314 = vmul.f32 %v290, 0.17677669
        %v315 = vmul.f32 %v309, 0.17677669
        %vm316 = vcmask 64512
        %v317 = vsel %vm316, %v312, -inf
        %318 = vmax.xlane.f32.xlu0 %v317
        %v319 = vpop.xlane.xlu0 %318
        %v320 = vsel %vm316, %v313, -inf
        %321 = vmax.xlane.f32.xlu0 %v320
        %v322 = vpop.xlane.xlu0 %321
        %v323 = vsel %vm316, %v314, -inf
        %324 = vmax.xlane.f32.xlu0 %v323
        %v325 = vpop.xlane.xlu0 %324
        %v326 = vsel %vm316, %v315, -inf
        %327 = vmax.xlane.f32.xlu0 %v326
        %v328 = vpop.xlane.xlu0 %327
        %v329 = vsub.f32 %v312, %v319
        %v330 = vsub.f32 %v313, %v322
        %v331 = vsub.f32 %v314, %v325
        %v332 = vsub.f32 %v315, %v328
        %v333 = vmul.f32 %v329, 1.442695
        %v334 = vpow.pop %v333
        %v335 = vmul.f32 %v330, 1.442695
        %v336 = vpow.pop %v335
        %v337 = vmul.f32 %v331, 1.442695
        %v338 = vpow.pop %v337
        %v339 = vmul.f32 %v332, 1.442695
        %v340 = vpow.pop %v339
        %v341 = vsel %vm316, %v334, 0.0
        %342 = vadd.xlane.f32.xlu0 %v341
        %v343 = vpop.xlane.xlu0 %342
        %v344 = vsel %vm316, %v336, 0.0
        %345 = vadd.xlane.f32.xlu0 %v344
        %v346 = vpop.xlane.xlu0 %345
        %v347 = vsel %vm316, %v338, 0.0
        %348 = vadd.xlane.f32.xlu0 %v347
        %v349 = vpop.xlane.xlu0 %348
        %v350 = vsel %vm316, %v340, 0.0
        %351 = vadd.xlane.f32.xlu0 %v350
        %v352 = vpop.xlane.xlu0 %351
        %v353 = vrcp.pop %v343
        %v354 = vrcp.pop %v346
        %v355 = vrcp.pop %v349
        %v356 = vrcp.pop %v352
        %v357 = vmul.f32 %v334, %v353
        %v358 = vmul.f32 %v336, %v354
        %v359 = vmul.f32 %v338, %v355
        %v360 = vmul.f32 %v340, %v356
        %361 = vst.msk [vmem:[%s222] sm:$0xff] %vm316, %v357
        %362 = vst.msk [vmem:[%s222 + $0x8] sm:$0xff] %vm316, %v358
        %363 = vst.msk [vmem:[%s222 + $0x10] sm:$0xff] %vm316, %v359
        %364 = vst.msk [vmem:[%s222 + $0x18] sm:$0xff] %vm316, %v360
        %s365 = sand.u32 %s98, 1
        %s366 = scalar_lea.sflag [#allocation4], %s365
        %s367 = sand.u32 %s98, 1
        %s368 = smul.addr %s367, 32
        %s369 = scalar_lea.vmem [#allocation7], %s368
        // Predicated region
        $region37: #{tpu_custom_call.1} parent=27 // pred_check
          %p370 = pneg %p108
        $region38: #{tpu_custom_call.1} parent=27 // pred_check_branch
          %372 = sbr.rel (%p370) target = $region40
        $region39: #{tpu_custom_call.1} parent=27 // pred_region
          %s373 = smul.u32 4, %s26
          %375 = vsyncadd %s366, 0
          %s376 = sadd.s32 %s27, %s373
          %s377 = smul.addr %s376, 8
          %s378 = scalar_lea.hbm %s2, %s377
          %s379 = sshll.u32 %s369, 4
          %s380 = int_to_ptr.vmem [resolvable:$true] %s379
          %s381 = sshll.u32 %s378, 4
          %s382 = int_to_ptr.hbm [resolvable:$true] %s381
          %387 = dma.vmem_to_hbm [thread:$0]  %s380, 512, %s382, %s366, 128, 128, 8
        $region40: #{tpu_custom_call.1} parent=27 // pred_fallthru
          _
      $region28: #{tpu_custom_call.1} parent=5 // pred_fallthru
        _
      %p388 = scmp.le.s32.totalorder 2, %s17
      // Predicated region
      $region41: #{tpu_custom_call.1} parent=5 // pred_check
        %p389 = pneg %p388
      $region42: #{tpu_custom_call.1} parent=5 // pred_check_branch
        %391 = sbr.rel (%p389) target = $region44
      $region43: #{tpu_custom_call.1} parent=5 // pred_region
        %s392 = ssub.s32 %s17, 2
        // Predicated region
        $region45: #{tpu_custom_call.1} parent=43 // pred_check
          %p393 = pneg %p114
        $region46: #{tpu_custom_call.1} parent=43 // pred_check_branch
          %395 = sbr.rel (%p393) target = $region48
        $region47: #{tpu_custom_call.1} parent=43 // pred_region
          %s396 = sand.u32 %s99, 1
          %s397 = scalar_lea.sflag [#allocation4], %s396
          %s398 = sand.u32 %s99, 1
          %s399 = smul.addr %s398, 32
          %s400 = scalar_lea.vmem [#allocation7], %s399
          %402 = dma.done %s397, 512
        $region48: #{tpu_custom_call.1} parent=43 // pred_fallthru
          _
      $region44: #{tpu_custom_call.1} parent=5 // pred_fallthru
        _
    $region6: #{tpu_custom_call.1} parent=1 // loop_footer
      %s21 = sadd.s32 1, %s17
    $region7: #{tpu_custom_call.1} parent=1 // loop_footer_branch
      %16 = sbr.rel target = $region3
    $region8: #{tpu_custom_call.1} parent=1 // loop_exit
      _
    %403 = vsyncpa [#allocation3], 1
    %s404 = scalar_lea.sflag [#allocation3], 1
    %405 = vsyncpa %s404, 1
    %406 = vsyncpa [#allocation6], 1
    %s407 = scalar_lea.sflag [#allocation6], 1
    %408 = vsyncpa %s407, 1
    %409 = vsyncpa [#allocation4], 1
    %s410 = scalar_lea.sflag [#allocation4], 1
    %411 = vsyncpa %s410, 1

</llo_original>
